<compile_context>
chip_gen: v5e
topology: v5e:2x2
jax: 0.10.0
libtpu: 0.0.40
codegen_flags: <defaults>
</compile_context>

<pallas_src>
from functools import partial

import jax
import jax.numpy as jnp
from jax.experimental import pallas as pl
from jax.experimental.pallas import tpu as pltpu


def _round_up(x, m):
    return (x + m - 1) // m * m


# ---------------------------------------------------------------------------
# Kernels
# ---------------------------------------------------------------------------
def _matmul_bias_kernel(x_ref, w_ref, b_ref, o_ref):
    """Single reduction step: o = x @ w + b (no scratch round trip)."""
    o_ref[...] = (
        jnp.dot(x_ref[...], w_ref[...], preferred_element_type=jnp.float32)
        + b_ref[...]
    ).astype(o_ref.dtype)


def _matmul_bias_acc_kernel(x_ref, w_ref, b_ref, o_ref, acc_ref):
    """Multi-step reduction with f32 VMEM accumulator (grid = (E, M, K))."""
    k = pl.program_id(2)

    @pl.when(k == 0)
    def _():
        acc_ref[...] = jnp.zeros_like(acc_ref)

    acc_ref[...] += jnp.dot(x_ref[...], w_ref[...],
                            preferred_element_type=jnp.float32)

    @pl.when(k == pl.num_programs(2) - 1)
    def _():
        o_ref[...] = (acc_ref[...] + b_ref[...]).astype(o_ref.dtype)


# ---------------------------------------------------------------------------
# im2col glue (plain JAX data movement, fused by XLA under jit)
# ---------------------------------------------------------------------------
def _im2col(x, K, stride, padding, Hp, Wp):
    """Return (B*Hp*Wp, C*K*K) patches flattened in (C, kh, kw) order."""
    B, C, H, W = x.shape
    xp = jnp.pad(x, ((0, 0), (0, 0), (padding, padding), (padding, padding)))
    if stride == K:
        # Non-overlapping patches (ratio == 1): cheap reshape.
        xp = xp[:, :, : Hp * K, : Wp * K]
        patches = xp.reshape(B, C, Hp, K, Wp, K)
    else:
        # Overlapping patches (ratio > 1): strided window gather.
        hidx = (jnp.arange(Hp) * stride)[:, None] + jnp.arange(K)[None, :]
        widx = (jnp.arange(Wp) * stride)[:, None] + jnp.arange(K)[None, :]
        patches = xp[:, :, hidx, :][..., widx]          # (B, C, Hp, K, Wp, K)
    # (B, C, Hp, K, Wp, K) -> (B, Hp, Wp, C, K, K) -> (B*Hp*Wp, C*K*K)
    patches = patches.transpose(0, 2, 4, 1, 3, 5).reshape(B * Hp * Wp, C * K * K)
    return patches


# ---------------------------------------------------------------------------
# Forward
# ---------------------------------------------------------------------------
@partial(jax.jit, static_argnames=("patch_size", "stride", "padding", "Hp", "Wp"))
def _patch_embed_impl(x, weight, bias, *, patch_size, stride, padding, Hp, Wp):
    B, C, H, W = x.shape
    E = weight.shape[0]
    K = patch_size

    patches = _im2col(x, K, stride, padding, Hp, Wp)     # (M, C*K*K)
    w2d = weight.reshape(E, C * K * K).T                 # (C*K*K, E)
    b2d = bias.reshape(1, E)                             # (1, E)

    M, KK = patches.shape
    out_dtype = x.dtype

    # --- tile selection ------------------------------------------------------
    # M tile: 256-1024 is the HBM-roofline sweet spot; multiple of 16 (bf16 pack).
    tm = min(512, _round_up(M, 16))
    # E tile: 256 matches the v6e/v7x 256-wide MXU; 128 keeps stores lane-dense
    # for small embed dims and matches the v5e 128-wide MXU.
    tn = 256 if (E > 128 and _round_up(E, 128) % 256 == 0) else 128
    # Contraction tile: bounded (<=1024) so per-step VMEM stays small even for
    # large C*K*K; split evenly to minimize zero-padding of the K dimension.
    KK128 = _round_up(KK, 128)
    n_k = pl.cdiv(KK128, 1024)
    tk = _round_up(pl.cdiv(KK128, n_k), 128)

    M_pad = _round_up(M, tm)
    E_pad = _round_up(E, tn)
    KK_pad = n_k * tk

    # Zero-pad + cast activations/weights to bf16 (native MXU rate); zero
    # padding does not change the matmul result, bias padding is zero.
    patches_p = jnp.pad(patches, ((0, M_pad - M), (0, KK_pad - KK)))
    patches_p = patches_p.astype(jnp.bfloat16)
    w_p = jnp.pad(w2d, ((0, KK_pad - KK), (0, E_pad - E))).astype(jnp.bfloat16)
    b_p = jnp.pad(b2d, ((0, 0), (0, E_pad - E))).astype(jnp.float32)

    n_e = E_pad // tn
    n_m = M_pad // tm

    compiler_params_2d = pltpu.CompilerParams(
        dimension_semantics=("parallel", "parallel"),
        vmem_limit_bytes=32 * 1024 * 1024,
    )
    compiler_params_3d = pltpu.CompilerParams(
        dimension_semantics=("parallel", "parallel", "arbitrary"),
        vmem_limit_bytes=32 * 1024 * 1024,
    )

    if n_k == 1:
        # Common ViT case: whole contraction fits one tile -> no accumulator
        # scratch, output written straight from the MXU result.
        out = pl.pallas_call(
            _matmul_bias_kernel,
            out_shape=jax.ShapeDtypeStruct((M_pad, E_pad), out_dtype),
            grid_spec=pltpu.PrefetchScalarGridSpec(
                num_scalar_prefetch=0,
                # E outermost: weight/bias block index is constant across the
                # inner M sweep, so those tiles stay resident in VMEM.
                grid=(n_e, n_m),
                in_specs=[
                    pl.BlockSpec((tm, tk), lambda j, i: (i, 0)),
                    pl.BlockSpec((tk, tn), lambda j, i: (0, j)),
                    pl.BlockSpec((1, tn), lambda j, i: (0, j)),
                ],
                out_specs=pl.BlockSpec((tm, tn), lambda j, i: (i, j)),
            ),
            compiler_params=compiler_params_2d,
        )(patches_p, w_p, b_p)
    else:
        out = pl.pallas_call(
            _matmul_bias_acc_kernel,
            out_shape=jax.ShapeDtypeStruct((M_pad, E_pad), out_dtype),
            grid_spec=pltpu.PrefetchScalarGridSpec(
                num_scalar_prefetch=0,
                grid=(n_e, n_m, n_k),
                in_specs=[
                    pl.BlockSpec((tm, tk), lambda j, i, k: (i, k)),
                    pl.BlockSpec((tk, tn), lambda j, i, k: (k, j)),
                    pl.BlockSpec((1, tn), lambda j, i, k: (0, j)),
                ],
                out_specs=pl.BlockSpec((tm, tn), lambda j, i, k: (i, j)),
                scratch_shapes=[pltpu.VMEM((tm, tn), jnp.float32)],
            ),
            compiler_params=compiler_params_3d,
        )(patches_p, w_p, b_p)

    return out[:M, :E].reshape(B, Hp * Wp, E)


def patch_embed_forward(x, weight, bias, *, patch_size, stride, padding):
    """Forward of PatchEmbed.  Returns (out, (Hp, Wp)) with out (B, Hp*Wp, E)."""
    B, C, H, W = x.shape
    K = patch_size
    Hp = (H + 2 * padding - K) // stride + 1
    Wp = (W + 2 * padding - K) // stride + 1
    out = _patch_embed_impl(x, weight, bias, patch_size=K, stride=stride,
                            padding=padding, Hp=Hp, Wp=Wp)
    return out, (Hp, Wp)


# ---------------------------------------------------------------------------
# Test
# ---------------------------------------------------------------------------
def _reference(x, weight, bias, stride, padding):
    B, C, H, W = x.shape
    E = weight.shape[0]
    ref = jax.lax.conv_general_dilated(
        x, weight, window_strides=(stride, stride),
        padding=[(padding, padding), (padding, padding)],
        dimension_numbers=("NCHW", "OIHW", "NCHW"))
    ref = ref + bias[None, :, None, None]
    Hp, Wp = ref.shape[2], ref.shape[3]
    return ref.reshape(B, E, Hp * Wp).transpose(0, 2, 1), (Hp, Wp)


def _run_case(key, B, C, H, W, K, E, ratio):
    stride = K // ratio
    padding = 4 + 2 * (ratio // 2 - 1)
    kx, kw, kb = jax.random.split(key, 3)
    x = jax.random.normal(kx, (B, C, H, W), dtype=jnp.float32)
    fan_in = C * K * K
    bound = 1.0 / (fan_in ** 0.5)
    weight = jax.random.uniform(kw, (E, C, K, K), jnp.float32, -bound, bound)
    bias = jax.random.uniform(kb, (E,), jnp.float32, -bound, bound)

    out, (Hp, Wp) = patch_embed_forward(
        x, weight, bias, patch_size=K, stride=stride, padding=padding)
    out = jax.block_until_ready(out)

    ref, (Hp_ref, Wp_ref) = _reference(x, weight, bias, stride, padding)
    assert out.shape == (B, Hp_ref * Wp_ref, E), (out.shape, (B, Hp_ref * Wp_ref, E))
    assert (Hp, Wp) == (Hp_ref, Wp_ref), ((Hp, Wp), (Hp_ref, Wp_ref))
    # Tolerance accounts for bf16 inputs with f32 accumulation vs f32 reference.
    assert jnp.allclose(out, ref, atol=2e-2, rtol=2e-2)


if __name__ == "__main__":
    key = jax.random.PRNGKey(0)
    k1, k2 = jax.random.split(key)

    # ratio == 1: PatchEmbed(img_size=16, patch_size=8, in_chans=4,
    # embed_dim=32, ratio=1) -> stride=8, padding=2 (non-overlapping patches).
    _run_case(k1, B=2, C=4, H=16, W=16, K=8, E=32, ratio=1)

    # ratio == 2: stride=4, padding=4 (overlapping patches) exercises the
    # gather-based im2col path.
    _run_case(k2, B=2, C=4, H=16, W=16, K=8, E=32, ratio=2)

    print("KERNEL_OK")
</pallas_src>

<mosaic_0001>
module attributes {stable_mosaic.version = 11 : i64} {
  func.func @_matmul_bias_kernel(%arg0: i32, %arg1: i32, %arg2: memref<16x256xbf16, #tpu.memory_space<vmem>>, %arg3: memref<256x128xbf16, #tpu.memory_space<vmem>>, %arg4: memref<1x128xf32, #tpu.memory_space<vmem>>, %arg5: memref<16x128xf32, #tpu.memory_space<vmem>>) attributes {dimension_semantics = [#tpu.dimension_semantics<parallel>, #tpu.dimension_semantics<parallel>], iteration_bounds = array<i64: 1, 1>, scalar_prefetch = 0 : i64, scratch_operands = 0 : i64, tpu.core_type = #tpu.core_type<tc>, window_params = [{transform_indices = @transform_0, window_bounds = array<i64: 16, 256>}, {transform_indices = @transform_1, window_bounds = array<i64: 256, 128>}, {transform_indices = @transform_2, window_bounds = array<i64: 1, 128>}, {transform_indices = @transform_3, window_bounds = array<i64: 16, 128>}]} {
    %c0 = arith.constant 0 : index
    %c0_0 = arith.constant 0 : index
    %0 = vector.load %arg2[%c0, %c0_0] : memref<16x256xbf16, #tpu.memory_space<vmem>>, vector<16x256xbf16>
    %c0_1 = arith.constant 0 : index
    %c0_2 = arith.constant 0 : index
    %1 = vector.load %arg3[%c0_1, %c0_2] : memref<256x128xbf16, #tpu.memory_space<vmem>>, vector<256x128xbf16>
    %cst = arith.constant dense<0.000000e+00> : vector<16x128xf32>
    %2 = tpu.matmul %0, %1, %cst {dimension_numbers = #tpu.dot_dimension_numbers<[1], [0], [0], [1], [0, 0, 1, 1], [], []>} : vector<16x256xbf16>, vector<256x128xbf16>, vector<16x128xf32> -> vector<16x128xf32>
    %c0_3 = arith.constant 0 : index
    %c0_4 = arith.constant 0 : index
    %3 = vector.load %arg4[%c0_3, %c0_4] : memref<1x128xf32, #tpu.memory_space<vmem>>, vector<1x128xf32>
    %4 = vector.broadcast %3 : vector<1x128xf32> to vector<16x128xf32>
    %5 = arith.addf %2, %4 : vector<16x128xf32>
    %c0_5 = arith.constant 0 : index
    %c0_6 = arith.constant 0 : index
    %6 = vector.load %arg5[%c0_5, %c0_6] : memref<16x128xf32, #tpu.memory_space<vmem>>, vector<16x128xf32>
    tpu.vector_store %arg5[%c0_5, %c0_6], %5 {strides = array<i32>} : memref<16x128xf32, #tpu.memory_space<vmem>>, vector<16x128xf32>,
    return
  }
  func.func @transform_0(%arg0: i32, %arg1: i32) -> (i32, i32) {
    %c0_i32 = arith.constant 0 : i32
    %c0_i32_0 = arith.constant 0 : i32
    return %arg1, %c0_i32 : i32, i32
  }
  func.func @transform_1(%arg0: i32, %arg1: i32) -> (i32, i32) {
    %c0_i32 = arith.constant 0 : i32
    %c0_i32_0 = arith.constant 0 : i32
    return %c0_i32, %arg0 : i32, i32
  }
  func.func @transform_2(%arg0: i32, %arg1: i32) -> (i32, i32) {
    %c0_i32 = arith.constant 0 : i32
    %c0_i32_0 = arith.constant 0 : i32
    return %c0_i32, %arg0 : i32, i32
  }
  func.func @transform_3(%arg0: i32, %arg1: i32) -> (i32, i32) {
    %c0_i32 = arith.constant 0 : i32
    return %arg1, %arg0 : i32, i32
  }
}

</mosaic_0001>

<llo_original>
// kernel: _patch_embed_impl.1
$region0: #{_patch_embed_impl.1}
  #allocation0 [shape = 'u32[]', space=smem, size = 0x4, offset = 0x4, fixed_abs, tag = 'smem constant byte address 0x4 - core index']
  #allocation1 [shape = 'u32[72,128]{1,0:T(1,128)}', space=vmem, size = 0x9000, scoped, tag = 'internal scratch']
  %s0 = inlined_call_operand.vmem [shape: bf16[16,256], index: 0, kind: input, shape index: {}]
  %s1 = inlined_call_operand.vmem [shape: bf16[256,128], index: 1, kind: input, shape index: {}]
  %s2 = inlined_call_operand.vmem [shape: f32[1,128], index: 2, kind: input, shape index: {}]
  %s3 = inlined_call_operand.vmem [shape: f32[16,128], index: 3, kind: output, shape index: {}]
  %s4 = sld [smem:[#allocation0]]
  $region22: #{_patch_embed_impl.1} parent=0
    _
  %s6 = ssub.s32 1, %s4
  %s7 = scalar_select 0, %s6, %s4
  // Predicated region
  $region2: #{_patch_embed_impl.1} parent=0 // pred_check
    _
  $region3: #{_patch_embed_impl.1} parent=0 // pred_check_branch
    %9 = sbr.rel (0) target = $region5
  $region4: #{_patch_embed_impl.1} parent=0 // pred_region
    _
  $region5: #{_patch_embed_impl.1} parent=0 // pred_fallthru
    _
  // Predicated region
  $region6: #{_patch_embed_impl.1} parent=0 // pred_check
    _
  $region7: #{_patch_embed_impl.1} parent=0 // pred_check_branch
    %11 = sbr.rel (0) target = $region9
  $region8: #{_patch_embed_impl.1} parent=0 // pred_region
    _
  $region9: #{_patch_embed_impl.1} parent=0 // pred_fallthru
    _
  // Predicated region
  $region10: #{_patch_embed_impl.1} parent=0 // pred_check
    _
  $region11: #{_patch_embed_impl.1} parent=0 // pred_check_branch
    %13 = sbr.rel (0) target = $region13
  $region12: #{_patch_embed_impl.1} parent=0 // pred_region
    _
  $region13: #{_patch_embed_impl.1} parent=0 // pred_fallthru
    _
  %v14 = vld [vmem:[%s0] sm:$0xff]
  %v15 = vld [vmem:[%s0 + $0x8] sm:$0xff]
  %v16 = vld [vmem:[%s1] sm:$0xf]
  %v17 = vld [vmem:[%s1 + $0x4] sm:$0xf]
  %v18 = vld [vmem:[%s1 + $0x8] sm:$0xf]
  %v19 = vld [vmem:[%s1 + $0xc] sm:$0xf]
  %v20 = vld [vmem:[%s1 + $0x10] sm:$0xf]
  %v21 = vld [vmem:[%s1 + $0x14] sm:$0xf]
  %v22 = vld [vmem:[%s1 + $0x18] sm:$0xf]
  %v23 = vld [vmem:[%s1 + $0x1c] sm:$0xf]
  %v24 = vld [vmem:[%s1 + $0x20] sm:$0xf]
  %v25 = vld [vmem:[%s1 + $0x24] sm:$0xf]
  %v26 = vld [vmem:[%s1 + $0x28] sm:$0xf]
  %v27 = vld [vmem:[%s1 + $0x2c] sm:$0xf]
  %v28 = vld [vmem:[%s1 + $0x30] sm:$0xf]
  %v29 = vld [vmem:[%s1 + $0x34] sm:$0xf]
  %v30 = vld [vmem:[%s1 + $0x38] sm:$0xf]
  %v31 = vld [vmem:[%s1 + $0x3c] sm:$0xf]
  %v32 = vld [vmem:[%s1 + $0x40] sm:$0xf]
  %v33 = vld [vmem:[%s1 + $0x44] sm:$0xf]
  %v34 = vld [vmem:[%s1 + $0x48] sm:$0xf]
  %v35 = vld [vmem:[%s1 + $0x4c] sm:$0xf]
  %v36 = vld [vmem:[%s1 + $0x50] sm:$0xf]
  %v37 = vld [vmem:[%s1 + $0x54] sm:$0xf]
  %v38 = vld [vmem:[%s1 + $0x58] sm:$0xf]
  %v39 = vld [vmem:[%s1 + $0x5c] sm:$0xf]
  %v40 = vld [vmem:[%s1 + $0x60] sm:$0xf]
  %v41 = vld [vmem:[%s1 + $0x64] sm:$0xf]
  %v42 = vld [vmem:[%s1 + $0x68] sm:$0xf]
  %v43 = vld [vmem:[%s1 + $0x6c] sm:$0xf]
  %v44 = vld [vmem:[%s1 + $0x70] sm:$0xf]
  %v45 = vld [vmem:[%s1 + $0x74] sm:$0xf]
  %v46 = vld [vmem:[%s1 + $0x78] sm:$0xf]
  %v47 = vld [vmem:[%s1 + $0x7c] sm:$0xf]
  %v48 = vld [vmem:[%s2] sm:$0x1]
  %v50 = vperm.slane %v48, 0
  %v54 = vunpack.c.l.b16 %v14
  %v55 = vunpack.c.h.b16 %v14
  %v56 = vunpack.c.l.b16 %v15
  %v57 = vunpack.c.h.b16 %v15
  %v58 = vpack.c.b16 %v56, %v54
  %v59 = vpack.c.b16 %v57, %v55
  %v94 = vunpack.c.l.b16 %v16
  %v95 = vunpack.c.l.b16 %v17
  %v96 = vunpack.c.l.b16 %v18
  %v97 = vunpack.c.l.b16 %v19
  %v98 = vunpack.c.l.b16 %v20
  %v99 = vunpack.c.l.b16 %v21
  %v100 = vunpack.c.l.b16 %v22
  %v101 = vunpack.c.l.b16 %v23
  %v102 = vunpack.c.l.b16 %v24
  %v103 = vunpack.c.l.b16 %v25
  %v104 = vunpack.c.l.b16 %v26
  %v105 = vunpack.c.l.b16 %v27
  %v106 = vunpack.c.l.b16 %v28
  %v107 = vunpack.c.l.b16 %v29
  %v108 = vunpack.c.l.b16 %v30
  %v109 = vunpack.c.l.b16 %v31
  %v110 = vunpack.c.l.b16 %v32
  %v111 = vunpack.c.l.b16 %v33
  %v112 = vunpack.c.l.b16 %v34
  %v113 = vunpack.c.l.b16 %v35
  %v114 = vunpack.c.l.b16 %v36
  %v115 = vunpack.c.l.b16 %v37
  %v116 = vunpack.c.l.b16 %v38
  %v117 = vunpack.c.l.b16 %v39
  %v118 = vunpack.c.l.b16 %v40
  %v119 = vunpack.c.l.b16 %v41
  %v120 = vunpack.c.l.b16 %v42
  %v121 = vunpack.c.l.b16 %v43
  %v122 = vunpack.c.l.b16 %v44
  %v123 = vunpack.c.l.b16 %v45
  %v124 = vunpack.c.l.b16 %v46
  %v125 = vunpack.c.l.b16 %v47
  %v126 = vpack.c.b16 %v95, %v94
  %v127 = vpack.c.b16 %v97, %v96
  %v128 = vpack.c.b16 %v99, %v98
  %v129 = vpack.c.b16 %v101, %v100
  %v130 = vpack.c.b16 %v103, %v102
  %v131 = vpack.c.b16 %v105, %v104
  %v132 = vpack.c.b16 %v107, %v106
  %v133 = vpack.c.b16 %v109, %v108
  %v134 = vpack.c.b16 %v111, %v110
  %v135 = vpack.c.b16 %v113, %v112
  %v136 = vpack.c.b16 %v115, %v114
  %v137 = vpack.c.b16 %v117, %v116
  %v138 = vpack.c.b16 %v119, %v118
  %v139 = vpack.c.b16 %v121, %v120
  %v140 = vpack.c.b16 %v123, %v122
  %v141 = vpack.c.b16 %v125, %v124
  %158 = vmatpush.bf16.msra.mxu0 %v133
  %159 = vmatpush.bf16.msra.mxu0 %v132
  %160 = vmatpush.bf16.msra.mxu0 %v131
  %161 = vmatpush.bf16.msra.mxu0 %v130
  %162 = vmatpush.bf16.msra.mxu0 %v129
  %163 = vmatpush.bf16.msra.mxu0 %v128
  %164 = vmatpush.bf16.msra.mxu0 %v127
  %165 = vmatpush.bf16.msra.mxu0 %v126
  %166 = vmatmul.bf16.gmra.mxu0 %v58
  %v167 = vpop.f32.mrf.mxu0
  %v168 = vadd.f32 %v50, %v167
  %v169 = vpop.f32.mrf.mxu0
  %v170 = vadd.f32 %v50, %v169
  %171 = vdwg.mxu0
  %172 = vmatpush.bf16.msra.mxu0 %v141
  %173 = vmatpush.bf16.msra.mxu0 %v140
  %174 = vmatpush.bf16.msra.mxu0 %v139
  %175 = vmatpush.bf16.msra.mxu0 %v138
  %176 = vmatpush.bf16.msra.mxu0 %v137
  %177 = vmatpush.bf16.msra.mxu0 %v136
  %178 = vmatpush.bf16.msra.mxu0 %v135
  %179 = vmatpush.bf16.msra.mxu0 %v134
  %180 = vmatmul.bf16.gmra.mxu0 %v59
  %v181 = vpop.f32.mrf.mxu0
  %v182 = vadd.f32 %v168, %v181
  %v183 = vpop.f32.mrf.mxu0
  %v184 = vadd.f32 %v170, %v183
  %185 = vdwg.mxu0
  %186 = vst [vmem:[%s3] sm:$0xff] %v182
  %187 = vst [vmem:[%s3 + $0x8] sm:$0xff] %v184
  // Predicated region
  $region14: #{_patch_embed_impl.1} parent=0 // pred_check
    _
  $region15: #{_patch_embed_impl.1} parent=0 // pred_check_branch
    %189 = sbr.rel (0) target = $region17
  $region16: #{_patch_embed_impl.1} parent=0 // pred_region
    _
  $region17: #{_patch_embed_impl.1} parent=0 // pred_fallthru
    _
  // Predicated region
  $region18: #{_patch_embed_impl.1} parent=0 // pred_check
    _
  $region19: #{_patch_embed_impl.1} parent=0 // pred_check_branch
    %191 = sbr.rel (0) target = $region21
  $region20: #{_patch_embed_impl.1} parent=0 // pred_region
    _
  $region21: #{_patch_embed_impl.1} parent=0 // pred_fallthru
    _

</llo_original>
